<compile_context>
chip_gen: v7x
topology: tpu7x:2x2x1
jax: 0.10.0
libtpu: 0.0.40
codegen_flags: <defaults>
</compile_context>

<pallas_src>
import jax
import jax.numpy as jnp
from jax.experimental import pallas as pl
from jax.experimental.pallas import tpu as pltpu


# -----------------------------------------------------------------------------
# Model hyperparameters (consistent with the PyTorch module configured as
# encoder_layer_sizes=[64, 32], latent_size=16, decoder_layer_sizes=[32, 64],
# conditional=True with 10 labels, have_scene_flow=True).
# -----------------------------------------------------------------------------
B = 8                    # demo batch (multiple of 8 sublanes)
X_DIM = 64               # encoder input features
ENC_H = 32               # encoder hidden size
LATENT = 16              # latent size
DEC_H = 32               # decoder hidden size
OUT_DIM = 64             # reconstruction size
NUM_LABELS = 10          # conditional one-hot width
SF_DIM = 3               # scene-flow width

PAD = 128                # fused-K / lane width of matmul inputs & packed output
COND = 64                # conditioning half-slab = lanes 64:128 of fused inputs
SF_OFF = NUM_LABELS              # 10 : scene-flow lanes inside the cond block
ONE_OFF = NUM_LABELS + SF_DIM    # 13 : always-1 bias lane inside the cond block
HEAD_ONE_COL = ENC_H             # 32 : h column forced to 1 (carries head biases)
DEC_ONE_COL = DEC_H              # 32 : d column forced to 1 (carries dec-out bias)
W_ROWS = 4 * PAD                 # 512: four full (128,128) weight tiles

# Packed output lane layout: [recon | mu | log_var | z | 0-pad].
O_MU = OUT_DIM                   # 64
O_LV = OUT_DIM + LATENT          # 80
O_Z = OUT_DIM + 2 * LATENT       # 96
O_END = OUT_DIM + 3 * LATENT     # 112


# -----------------------------------------------------------------------------
# Pallas kernel: full VAE forward for one batch tile.
# -----------------------------------------------------------------------------
def vae_kernel(lbl_ref, x_ref, sf_ref, eps_ref, w_ref, out_ref):
    f32 = jnp.float32
    bf16 = jnp.bfloat16
    tb = out_ref.shape[0]

    x = x_ref[...]            # (tb, 64)  f32
    sf = sf_ref[...]          # (tb, 3)   f32
    eps = eps_ref[...]        # (tb, 16)  f32
    lbl = lbl_ref[...]        # (tb, 1)   int32

    # ---- Conditioning half-slab (lanes 64:128 of both fused inputs), built in
    #      registers from a lane iota: [one-hot(label) | scene_flow | 1 | 0]. ----
    lane = jax.lax.broadcasted_iota(jnp.int32, (tb, COND), 1)
    cond = (lane == lbl).astype(f32)                                # one-hot, lanes 0:10
    cond = cond + jnp.where(lane == SF_OFF + 0, sf[:, 0:1], 0.0)
    cond = cond + jnp.where(lane == SF_OFF + 1, sf[:, 1:2], 0.0)
    cond = cond + jnp.where(lane == SF_OFF + 2, sf[:, 2:3], 0.0)
    cond = cond + (lane == ONE_OFF).astype(f32)                     # always-1 bias lane

    # ---- Encoder layer 0: fused [x | cond] -> one full-tile (128,128) matmul.
    #      Bias is folded into the weight row of the always-1 lane; the same row
    #      writes a 1 into column 32 of h so the head biases ride the next matmul.
    enc_in = jnp.concatenate([x, cond], axis=-1).astype(bf16)       # (tb, 128)
    h = jnp.dot(enc_in, w_ref[0:128, :], preferred_element_type=f32)
    h = jnp.maximum(h, 0.0)                                         # (tb, 128), h[:,32] == 1

    # ---- Fused [mu | log_var] head: one full-tile matmul (biases via h[:,32]). ----
    ml = jnp.dot(h.astype(bf16), w_ref[128:256, :], preferred_element_type=f32)
    mu = ml[:, 0:LATENT]                                            # (tb, 16)
    lv = ml[:, LATENT:2 * LATENT]                                   # (tb, 16)

    # ---- Reparameterize (exact f32): z = mu + eps * exp(0.5 * log_var). ----
    z = mu + eps * jnp.exp(0.5 * lv)

    # ---- Decoder layer 0: fused [z | 0-pad | cond] assembled in registers
    #      (no VMEM scratch round-trip), one full-tile matmul.  eps never enters
    #      these lanes, so no reliance on zero weight rows. ----
    dec_in = jnp.concatenate(
        [z, jnp.zeros((tb, COND - LATENT), f32), cond], axis=-1).astype(bf16)
    d = jnp.dot(dec_in, w_ref[256:384, :], preferred_element_type=f32)
    d = jnp.maximum(d, 0.0)                                         # (tb, 128), d[:,32] == 1

    # ---- Decoder output layer (bias via d[:,32]) + exact f32 sigmoid. ----
    r = jnp.dot(d.astype(bf16), w_ref[384:512, :], preferred_element_type=f32)
    recon = 1.0 / (1.0 + jnp.exp(-r[:, 0:OUT_DIM]))                 # (tb, 64)

    # ---- Single lane-dense, unmasked (tb,128) store: [recon | mu | lv | z | 0]. ----
    out_ref[...] = jnp.concatenate(
        [recon, mu, lv, z, jnp.zeros((tb, PAD - O_END), f32)], axis=-1)


# -----------------------------------------------------------------------------
# Wrapper: grid over batch rows, weights VMEM-resident across grid steps.
# -----------------------------------------------------------------------------
@jax.jit
def vae_forward(x, c_idx, scene_flow, eps, w_slab):
    """Full conditional-VAE forward. Returns (recon_x, means, log_var, z)."""
    bsz = x.shape[0]
    lbl = c_idx.reshape(bsz, 1).astype(jnp.int32)

    # TILE_B: whole (small) batch in one step; for real batches tile at 256
    # (v6e/v7x) / 128 (v5e) so "parallel" semantics shards steps across cores.
    tile_b = bsz if bsz <= 256 else 256
    n_tiles = pl.cdiv(bsz, tile_b)

    cost = pl.CostEstimate(
        flops=4 * 2 * bsz * PAD * PAD,                      # four (tb,128)x(128,128) matmuls
        transcendentals=bsz * (LATENT + OUT_DIM),           # exp in reparam + sigmoid
        bytes_accessed=(w_slab.size * 2 + lbl.size * 4 + x.size * 4
                        + scene_flow.size * 4 + eps.size * 4 + bsz * PAD * 4))

    packed = pl.pallas_call(
        vae_kernel,
        out_shape=jax.ShapeDtypeStruct((bsz, PAD), jnp.float32),
        grid=(n_tiles,),
        in_specs=[
            pl.BlockSpec((tile_b, 1), lambda i: (i, 0)),            # labels
            pl.BlockSpec((tile_b, X_DIM), lambda i: (i, 0)),        # x
            pl.BlockSpec((tile_b, SF_DIM), lambda i: (i, 0)),       # scene flow
            pl.BlockSpec((tile_b, LATENT), lambda i: (i, 0)),       # eps
            pl.BlockSpec((W_ROWS, PAD), lambda i: (0, 0)),          # weights (resident)
        ],
        out_specs=pl.BlockSpec((tile_b, PAD), lambda i: (i, 0)),
        compiler_params=pltpu.CompilerParams(
            dimension_semantics=("parallel",)),
        cost_estimate=cost,
    )(lbl, x, scene_flow, eps, w_slab)

    recon = packed[:, 0:OUT_DIM]
    mu = packed[:, O_MU:O_LV]
    lv = packed[:, O_LV:O_Z]
    z = packed[:, O_Z:O_END]
    return recon, mu, lv, z


# -----------------------------------------------------------------------------
# Parameter init (torch-Linear-equivalent layout: W stored as (in, out)),
# one-time packing into the single weight slab, pure-JAX f32 reference.
# -----------------------------------------------------------------------------
def init_params(key):
    keys = jax.random.split(key, 16)
    scale = 0.1

    def w(k, shape):
        return scale * jax.random.normal(k, shape, dtype=jnp.float32)

    return {
        # Encoder layer 0: Linear(64 + 10 + 3 -> 32), split by input group.
        "ew_x": w(keys[0], (X_DIM, ENC_H)),
        "ew_c": w(keys[1], (NUM_LABELS, ENC_H)),
        "ew_sf": w(keys[2], (SF_DIM, ENC_H)),
        "eb0": w(keys[3], (1, ENC_H)),
        # means / log_var heads: Linear(32 -> 16).
        "wmu": w(keys[4], (ENC_H, LATENT)),
        "bmu": w(keys[5], (1, LATENT)),
        "wlv": w(keys[6], (ENC_H, LATENT)),
        "blv": w(keys[7], (1, LATENT)),
        # Decoder layer 0: Linear(16 + 10 + 3 -> 32), split by input group.
        "dw_z": w(keys[8], (LATENT, DEC_H)),
        "dw_c": w(keys[9], (NUM_LABELS, DEC_H)),
        "dw_sf": w(keys[10], (SF_DIM, DEC_H)),
        "db0": w(keys[11], (1, DEC_H)),
        # Decoder output layer: Linear(32 -> 64) + Sigmoid.
        "dw1": w(keys[12], (DEC_H, OUT_DIM)),
        "db1": w(keys[13], (1, OUT_DIM)),
    }


def pack_params(p):
    """One-time packing of all params + biases into one (512,128) bf16 slab."""
    slab = jnp.zeros((W_ROWS, PAD), jnp.float32)
    c0 = COND   # row offset of the conditioning group inside each fused-K block

    # Block 0 (rows   0:128): encoder layer 0, input layout [x | cond].
    slab = slab.at[0:X_DIM, 0:ENC_H].set(p["ew_x"])
    slab = slab.at[c0:c0 + NUM_LABELS, 0:ENC_H].set(p["ew_c"])
    slab = slab.at[c0 + SF_OFF:c0 + SF_OFF + SF_DIM, 0:ENC_H].set(p["ew_sf"])
    slab = slab.at[c0 + ONE_OFF, 0:ENC_H].set(p["eb0"][0])          # folded bias
    slab = slab.at[c0 + ONE_OFF, HEAD_ONE_COL].set(1.0)             # h[:,32] := 1

    # Block 1 (rows 128:256): fused [mu | log_var] head on h (cols 0:32 of h).
    r1 = PAD
    slab = slab.at[r1:r1 + ENC_H, 0:LATENT].set(p["wmu"])
    slab = slab.at[r1:r1 + ENC_H, LATENT:2 * LATENT].set(p["wlv"])
    slab = slab.at[r1 + HEAD_ONE_COL, 0:LATENT].set(p["bmu"][0])    # folded biases
    slab = slab.at[r1 + HEAD_ONE_COL, LATENT:2 * LATENT].set(p["blv"][0])

    # Block 2 (rows 256:384): decoder layer 0, input layout [z | 0 | cond].
    r2 = 2 * PAD
    slab = slab.at[r2:r2 + LATENT, 0:DEC_H].set(p["dw_z"])
    slab = slab.at[r2 + c0:r2 + c0 + NUM_LABELS, 0:DEC_H].set(p["dw_c"])
    slab = slab.at[r2 + c0 + SF_OFF:r2 + c0 + SF_OFF + SF_DIM, 0:DEC_H].set(p["dw_sf"])
    slab = slab.at[r2 + c0 + ONE_OFF, 0:DEC_H].set(p["db0"][0])     # folded bias
    slab = slab.at[r2 + c0 + ONE_OFF, DEC_ONE_COL].set(1.0)         # d[:,32] := 1

    # Block 3 (rows 384:512): decoder output layer Linear(32 -> 64).
    r3 = 3 * PAD
    slab = slab.at[r3:r3 + DEC_H, 0:OUT_DIM].set(p["dw1"])
    slab = slab.at[r3 + DEC_H, 0:OUT_DIM].set(p["db1"][0])          # folded bias

    return slab.astype(jnp.bfloat16)


def vae_reference(x, c_idx, scene_flow, eps, params):
    """Pure-JAX f32 reference matching the PyTorch forward semantics."""
    onehot = jax.nn.one_hot(c_idx, NUM_LABELS, dtype=jnp.float32)
    h = (x @ params["ew_x"] + onehot @ params["ew_c"]
         + scene_flow @ params["ew_sf"] + params["eb0"])
    h = jnp.maximum(h, 0.0)
    mu = h @ params["wmu"] + params["bmu"]
    lv = h @ params["wlv"] + params["blv"]
    z = mu + eps * jnp.exp(0.5 * lv)
    d = (z @ params["dw_z"] + onehot @ params["dw_c"]
         + scene_flow @ params["dw_sf"] + params["db0"])
    d = jnp.maximum(d, 0.0)
    r = d @ params["dw1"] + params["db1"]
    recon = jax.nn.sigmoid(r)
    return recon, mu, lv, z


if __name__ == "__main__":
    key = jax.random.PRNGKey(0)
    k_param, k_x, k_c, k_sf, k_eps = jax.random.split(key, 5)

    params = init_params(k_param)
    w_slab = pack_params(params)                 # packed once, reused per call

    x = jax.random.normal(k_x, (B, X_DIM), dtype=jnp.float32)
    c_idx = jax.random.randint(k_c, (B,), 0, NUM_LABELS)
    scene_flow = jax.random.normal(k_sf, (B, SF_DIM), dtype=jnp.float32)
    # eps for reparameterization (torch.randn_like equivalent), made explicit
    # so the kernel is deterministic.
    eps = jax.random.normal(k_eps, (B, LATENT), dtype=jnp.float32)

    recon_x, means, log_var, z = vae_forward(x, c_idx, scene_flow, eps, w_slab)
    jax.block_until_ready((recon_x, means, log_var, z))

    # Sanity check vs f32 reference (bf16 MXU operands + bf16-folded biases, so
    # loose tolerance).
    ref = vae_reference(x, c_idx, scene_flow, eps, params)
    for got, want in zip((recon_x, means, log_var, z), ref):
        assert got.shape == want.shape
        assert jnp.allclose(got, want, atol=5e-2, rtol=5e-2), "mismatch vs reference"

    print("KERNEL_OK")
</pallas_src>

<mosaic_0001>
module attributes {stable_mosaic.version = 11 : i64} {
  func.func @vae_kernel(%arg0: i32, %arg1: memref<8x1xi32, #tpu.memory_space<vmem>>, %arg2: memref<8x64xf32, #tpu.memory_space<vmem>>, %arg3: memref<8x3xf32, #tpu.memory_space<vmem>>, %arg4: memref<8x16xf32, #tpu.memory_space<vmem>>, %arg5: memref<512x128xbf16, #tpu.memory_space<vmem>>, %arg6: memref<8x128xf32, #tpu.memory_space<vmem>>) attributes {dimension_semantics = [#tpu.dimension_semantics<parallel>], iteration_bounds = array<i64: 1>, scalar_prefetch = 0 : i64, scratch_operands = 0 : i64, tpu.core_type = #tpu.core_type<tc>, window_params = [{transform_indices = @transform_0, window_bounds = array<i64: 8, 1>}, {transform_indices = @transform_1, window_bounds = array<i64: 8, 64>}, {transform_indices = @transform_2, window_bounds = array<i64: 8, 3>}, {transform_indices = @transform_3, window_bounds = array<i64: 8, 16>}, {pipeline_mode = #tpu.pipeline_mode<synchronous>, transform_indices = @transform_4, window_bounds = array<i64: 512, 128>}, {transform_indices = @transform_5, window_bounds = array<i64: 8, 128>}]} {
    %c0 = arith.constant 0 : index
    %c0_0 = arith.constant 0 : index
    %0 = vector.load %arg2[%c0, %c0_0] : memref<8x64xf32, #tpu.memory_space<vmem>>, vector<8x64xf32>
    %c0_1 = arith.constant 0 : index
    %c0_2 = arith.constant 0 : index
    %1 = vector.load %arg3[%c0_1, %c0_2] : memref<8x3xf32, #tpu.memory_space<vmem>>, vector<8x3xf32>
    %c0_3 = arith.constant 0 : index
    %c0_4 = arith.constant 0 : index
    %2 = vector.load %arg4[%c0_3, %c0_4] : memref<8x16xf32, #tpu.memory_space<vmem>>, vector<8x16xf32>
    %c0_5 = arith.constant 0 : index
    %c0_6 = arith.constant 0 : index
    %3 = vector.load %arg1[%c0_5, %c0_6] : memref<8x1xi32, #tpu.memory_space<vmem>>, vector<8x1xi32>
    %4 = tpu.iota {dimensions = array<i32: 1>} : vector<8x64xi32>
    %5 = vector.broadcast %3 : vector<8x1xi32> to vector<8x64xi32>
    %6 = arith.cmpi eq, %4, %5 : vector<8x64xi32>
    %7 = arith.extui %6 : vector<8x64xi1> to vector<8x64xi32>
    %8 = arith.sitofp %7 : vector<8x64xi32> to vector<8x64xf32>
    %c10_i32 = arith.constant 10 : i32
    %9 = vector.broadcast %c10_i32 : i32 to vector<8x64xi32>
    %10 = arith.cmpi eq, %4, %9 : vector<8x64xi32>
    %11 = vector.extract_strided_slice %1 {offsets = [0, 0], sizes = [8, 1], strides = [1, 1]} : vector<8x3xf32> to vector<8x1xf32>
    %cst = arith.constant 0.000000e+00 : f32
    %12 = vector.shape_cast %11 : vector<8x1xf32> to vector<8x1xf32>
    %13 = vector.broadcast %12 : vector<8x1xf32> to vector<8x64xf32>
    %14 = vector.broadcast %cst : f32 to vector<8x64xf32>
    %15 = arith.select %10, %13, %14 : vector<8x64xi1>, vector<8x64xf32>
    %16 = arith.addf %8, %15 : vector<8x64xf32>
    %c11_i32 = arith.constant 11 : i32
    %17 = vector.broadcast %c11_i32 : i32 to vector<8x64xi32>
    %18 = arith.cmpi eq, %4, %17 : vector<8x64xi32>
    %19 = vector.extract_strided_slice %1 {offsets = [0, 1], sizes = [8, 1], strides = [1, 1]} : vector<8x3xf32> to vector<8x1xf32>
    %cst_7 = arith.constant 0.000000e+00 : f32
    %20 = vector.shape_cast %19 : vector<8x1xf32> to vector<8x1xf32>
    %21 = vector.broadcast %20 : vector<8x1xf32> to vector<8x64xf32>
    %22 = vector.broadcast %cst_7 : f32 to vector<8x64xf32>
    %23 = arith.select %18, %21, %22 : vector<8x64xi1>, vector<8x64xf32>
    %24 = arith.addf %16, %23 : vector<8x64xf32>
    %c12_i32 = arith.constant 12 : i32
    %25 = vector.broadcast %c12_i32 : i32 to vector<8x64xi32>
    %26 = arith.cmpi eq, %4, %25 : vector<8x64xi32>
    %27 = vector.extract_strided_slice %1 {offsets = [0, 2], sizes = [8, 1], strides = [1, 1]} : vector<8x3xf32> to vector<8x1xf32>
    %cst_8 = arith.constant 0.000000e+00 : f32
    %28 = vector.shape_cast %27 : vector<8x1xf32> to vector<8x1xf32>
    %29 = vector.broadcast %28 : vector<8x1xf32> to vector<8x64xf32>
    %30 = vector.broadcast %cst_8 : f32 to vector<8x64xf32>
    %31 = arith.select %26, %29, %30 : vector<8x64xi1>, vector<8x64xf32>
    %32 = arith.addf %24, %31 : vector<8x64xf32>
    %c13_i32 = arith.constant 13 : i32
    %33 = vector.broadcast %c13_i32 : i32 to vector<8x64xi32>
    %34 = arith.cmpi eq, %4, %33 : vector<8x64xi32>
    %35 = arith.extui %34 : vector<8x64xi1> to vector<8x64xi32>
    %36 = arith.sitofp %35 : vector<8x64xi32> to vector<8x64xf32>
    %37 = arith.addf %32, %36 : vector<8x64xf32>
    %38 = tpu.concatenate %0, %37 in 1 : vector<8x64xf32>, vector<8x64xf32> -> vector<8x128xf32>
    %39 = arith.truncf %38 : vector<8x128xf32> to vector<8x128xbf16>
    %c0_9 = arith.constant 0 : index
    %c0_10 = arith.constant 0 : index
    %40 = vector.load %arg5[%c0_9, %c0_10] : memref<512x128xbf16, #tpu.memory_space<vmem>>, vector<128x128xbf16>
    %cst_11 = arith.constant dense<0.000000e+00> : vector<8x128xf32>
    %41 = tpu.matmul %39, %40, %cst_11 {dimension_numbers = #tpu.dot_dimension_numbers<[1], [0], [0], [1], [0, 0, 1, 1], [], []>} : vector<8x128xbf16>, vector<128x128xbf16>, vector<8x128xf32> -> vector<8x128xf32>
    %cst_12 = arith.constant 0.000000e+00 : f32
    %42 = vector.broadcast %cst_12 : f32 to vector<8x128xf32>
    %43 = arith.maximumf %41, %42 : vector<8x128xf32>
    %44 = arith.truncf %43 : vector<8x128xf32> to vector<8x128xbf16>
    %c128 = arith.constant 128 : index
    %c0_13 = arith.constant 0 : index
    %45 = vector.load %arg5[%c128, %c0_13] : memref<512x128xbf16, #tpu.memory_space<vmem>>, vector<128x128xbf16>
    %cst_14 = arith.constant dense<0.000000e+00> : vector<8x128xf32>
    %46 = tpu.matmul %44, %45, %cst_14 {dimension_numbers = #tpu.dot_dimension_numbers<[1], [0], [0], [1], [0, 0, 1, 1], [], []>} : vector<8x128xbf16>, vector<128x128xbf16>, vector<8x128xf32> -> vector<8x128xf32>
    %47 = vector.extract_strided_slice %46 {offsets = [0, 0], sizes = [8, 16], strides = [1, 1]} : vector<8x128xf32> to vector<8x16xf32>
    %48 = vector.extract_strided_slice %46 {offsets = [0, 16], sizes = [8, 16], strides = [1, 1]} : vector<8x128xf32> to vector<8x16xf32>
    %cst_15 = arith.constant 5.000000e-01 : f32
    %49 = vector.broadcast %cst_15 : f32 to vector<8x16xf32>
    %50 = arith.mulf %49, %48 : vector<8x16xf32>
    %51 = math.exp %50 : vector<8x16xf32>
    %52 = arith.mulf %2, %51 : vector<8x16xf32>
    %53 = arith.addf %47, %52 : vector<8x16xf32>
    %cst_16 = arith.constant 0.000000e+00 : f32
    %54 = vector.broadcast %cst_16 : f32 to vector<8x48xf32>
    %55 = tpu.concatenate %53, %54, %37 in 1 : vector<8x16xf32>, vector<8x48xf32>, vector<8x64xf32> -> vector<8x128xf32>
    %56 = arith.truncf %55 : vector<8x128xf32> to vector<8x128xbf16>
    %c256 = arith.constant 256 : index
    %c0_17 = arith.constant 0 : index
    %57 = vector.load %arg5[%c256, %c0_17] : memref<512x128xbf16, #tpu.memory_space<vmem>>, vector<128x128xbf16>
    %cst_18 = arith.constant dense<0.000000e+00> : vector<8x128xf32>
    %58 = tpu.matmul %56, %57, %cst_18 {dimension_numbers = #tpu.dot_dimension_numbers<[1], [0], [0], [1], [0, 0, 1, 1], [], []>} : vector<8x128xbf16>, vector<128x128xbf16>, vector<8x128xf32> -> vector<8x128xf32>
    %cst_19 = arith.constant 0.000000e+00 : f32
    %59 = vector.broadcast %cst_19 : f32 to vector<8x128xf32>
    %60 = arith.maximumf %58, %59 : vector<8x128xf32>
    %61 = arith.truncf %60 : vector<8x128xf32> to vector<8x128xbf16>
    %c384 = arith.constant 384 : index
    %c0_20 = arith.constant 0 : index
    %62 = vector.load %arg5[%c384, %c0_20] : memref<512x128xbf16, #tpu.memory_space<vmem>>, vector<128x128xbf16>
    %cst_21 = arith.constant dense<0.000000e+00> : vector<8x128xf32>
    %63 = tpu.matmul %61, %62, %cst_21 {dimension_numbers = #tpu.dot_dimension_numbers<[1], [0], [0], [1], [0, 0, 1, 1], [], []>} : vector<8x128xbf16>, vector<128x128xbf16>, vector<8x128xf32> -> vector<8x128xf32>
    %64 = vector.extract_strided_slice %63 {offsets = [0, 0], sizes = [8, 64], strides = [1, 1]} : vector<8x128xf32> to vector<8x64xf32>
    %cst_22 = arith.constant 0.000000e+00 : f32
    %65 = vector.broadcast %cst_22 : f32 to vector<8x64xf32>
    %66 = arith.subf %65, %64 : vector<8x64xf32>
    %67 = math.exp %66 : vector<8x64xf32>
    %cst_23 = arith.constant 1.000000e+00 : f32
    %68 = vector.broadcast %cst_23 : f32 to vector<8x64xf32>
    %69 = arith.addf %68, %67 : vector<8x64xf32>
    %cst_24 = arith.constant 1.000000e+00 : f32
    %70 = vector.broadcast %cst_24 : f32 to vector<8x64xf32>
    %71 = arith.divf %70, %69 : vector<8x64xf32>
    %cst_25 = arith.constant 0.000000e+00 : f32
    %72 = vector.broadcast %cst_25 : f32 to vector<8x16xf32>
    %73 = tpu.concatenate %71, %47, %48, %53, %72 in 1 : vector<8x64xf32>, vector<8x16xf32>, vector<8x16xf32>, vector<8x16xf32>, vector<8x16xf32> -> vector<8x128xf32>
    %c0_26 = arith.constant 0 : index
    %c0_27 = arith.constant 0 : index
    %74 = vector.load %arg6[%c0_26, %c0_27] : memref<8x128xf32, #tpu.memory_space<vmem>>, vector<8x128xf32>
    tpu.vector_store %arg6[%c0_26, %c0_27], %73 {strides = array<i32>} : memref<8x128xf32, #tpu.memory_space<vmem>>, vector<8x128xf32>,
    return
  }
  func.func @transform_0(%arg0: i32) -> (i32, i32) {
    %c0_i32 = arith.constant 0 : i32
    %c0_i32_0 = arith.constant 0 : i32
    return %arg0, %c0_i32 : i32, i32
  }
  func.func @transform_1(%arg0: i32) -> (i32, i32) {
    %c0_i32 = arith.constant 0 : i32
    %c0_i32_0 = arith.constant 0 : i32
    return %arg0, %c0_i32 : i32, i32
  }
  func.func @transform_2(%arg0: i32) -> (i32, i32) {
    %c0_i32 = arith.constant 0 : i32
    %c0_i32_0 = arith.constant 0 : i32
    return %arg0, %c0_i32 : i32, i32
  }
  func.func @transform_3(%arg0: i32) -> (i32, i32) {
    %c0_i32 = arith.constant 0 : i32
    %c0_i32_0 = arith.constant 0 : i32
    return %arg0, %c0_i32 : i32, i32
  }
  func.func @transform_4(%arg0: i32) -> (i32, i32) {
    %c0_i32 = arith.constant 0 : i32
    %c0_i32_0 = arith.constant 0 : i32
    %c0_i32_1 = arith.constant 0 : i32
    return %c0_i32, %c0_i32_0 : i32, i32
  }
  func.func @transform_5(%arg0: i32) -> (i32, i32) {
    %c0_i32 = arith.constant 0 : i32
    %c0_i32_0 = arith.constant 0 : i32
    return %arg0, %c0_i32 : i32, i32
  }
}

</mosaic_0001>

<llo_original>
// kernel: vae_forward.1
$region0: #{vae_forward.1}
  #allocation0 [shape = 'u32[]', space=smem, size = 0x4, offset = 0x4, fixed_abs, tag = 'smem constant byte address 0x4 - core index']
  #allocation1 [shape = 'u32[144,128]{1,0:T(1,128)}', space=vmem, size = 0x12000, scoped, tag = 'internal scratch']
  %s0 = inlined_call_operand.vmem [shape: s32[8,1], index: 0, kind: input, shape index: {}]
  %s1 = inlined_call_operand.vmem [shape: f32[8,64], index: 1, kind: input, shape index: {}]
  %s2 = inlined_call_operand.vmem [shape: f32[8,3], index: 2, kind: input, shape index: {}]
  %s3 = inlined_call_operand.vmem [shape: f32[8,16], index: 3, kind: input, shape index: {}]
  %s4 = inlined_call_operand.hbm [shape: bf16[512,128], index: 4, kind: input, shape index: {}]
  %s5 = inlined_call_operand.vmem [shape: f32[8,128], index: 5, kind: output, shape index: {}]
  %s6 = sld [smem:[#allocation0]]
  $region34: #{vae_forward.1} parent=0
    _
  %s8 = ssub.s32 1, %s6
  %s9 = scalar_select 0, %s8, %s6
  $region1: #{vae_forward.1} parent=0
    #allocation2 [shape = 'u8[131072]{0}', space=vmem, size = 0x20000, scoped, tag = 'input window, operand 4, single buffered']
    #allocation3 [shape = 's32[1]{0}', space=sflag, size = 0x4, scoped, tag = 'scoped memory for vae_forward.1']
    %10 = vsyncpa [#allocation3], 0
    // Predicated region
    $region2: #{vae_forward.1} parent=1 // pred_check
      _
    $region3: #{vae_forward.1} parent=1 // pred_check_branch
      %12 = sbr.rel (0) target = $region5
    $region4: #{vae_forward.1} parent=1 // pred_region
      _
    $region5: #{vae_forward.1} parent=1 // pred_fallthru
      _
    // Predicated region
    $region6: #{vae_forward.1} parent=1 // pred_check
      _
    $region7: #{vae_forward.1} parent=1 // pred_check_branch
      %14 = sbr.rel (0) target = $region9
    $region8: #{vae_forward.1} parent=1 // pred_region
      _
    $region9: #{vae_forward.1} parent=1 // pred_fallthru
      _
    // Predicated region
    $region10: #{vae_forward.1} parent=1 // pred_check
      _
    $region11: #{vae_forward.1} parent=1 // pred_check_branch
      %16 = sbr.rel (0) target = $region13
    $region12: #{vae_forward.1} parent=1 // pred_region
      _
    $region13: #{vae_forward.1} parent=1 // pred_fallthru
      _
    // Predicated region
    $region14: #{vae_forward.1} parent=1 // pred_check
      _
    $region15: #{vae_forward.1} parent=1 // pred_check_branch
      %18 = sbr.rel (0) target = $region17
    $region16: #{vae_forward.1} parent=1 // pred_region
      _
    $region17: #{vae_forward.1} parent=1 // pred_fallthru
      _
    // Predicated region
    $region18: #{vae_forward.1} parent=1 // pred_check
      _
    $region19: #{vae_forward.1} parent=1 // pred_check_branch
      %20 = sbr.rel (0) target = $region21
    $region20: #{vae_forward.1} parent=1 // pred_region
      %s22 = ssub.s32 4096, 4096
      %23 = vsyncadd [#allocation3], %s22
      %s24 = sshll.u32 [#allocation2], 4
      %s25 = int_to_ptr.vmem [resolvable:$true] %s24
      %30 = dma.hbm_to_vmem [thread:$0]  %s4, 4096, %s25, [#allocation3], 64, 64, 4
    $region21: #{vae_forward.1} parent=1 // pred_fallthru
      _
    // Predicated region
    $region22: #{vae_forward.1} parent=1 // pred_check
      _
    $region23: #{vae_forward.1} parent=1 // pred_check_branch
      %32 = sbr.rel (0) target = $region25
    $region24: #{vae_forward.1} parent=1 // pred_region
      %33 = dma.done [#allocation3], 4096
    $region25: #{vae_forward.1} parent=1 // pred_fallthru
      _
    %v35 = vld [vmem:[%s1] sm:$0xff]
    %v36 = vld [vmem:[%s2] sm:$0xff]
    %v37 = vld [vmem:[%s3] sm:$0xff]
    %v38 = vld [vmem:[%s0] sm:$0xff]
    %v39 = vlaneseq
    %v40 = vand.u32 %v39, 127
    %41 = vset.pattern.permute.xlu0 0
    %42 = vperm.xlu0 %41, %v38
    %v43 = vpop.permute.xlu0 %42
    %vm44 = vcmp.eq.s32.totalorder %v40, %v43
    %v45 = vsel %vm44, 1, 0
    %v46 = vcvt.s32.f32 %v45
    %vm47 = vcmp.eq.s32.totalorder %v40, 10
    %49 = vset.pattern.permute.xlu0 0
    %50 = vperm.xlu0 %49, %v36
    %v51 = vpop.permute.xlu0 %50
    %v53 = vsel %vm47, %v51, 0.0
    %v54 = vadd.f32 %v46, %v53
    %vm55 = vcmp.eq.s32.totalorder %v40, 11
    %56 = vset.pattern.permute.xlu0 1
    %57 = vperm.xlu0 %56, %v36
    %v58 = vpop.permute.xlu0 %57
    %v60 = vsel %vm55, %v58, 0.0
    %v61 = vadd.f32 %v54, %v60
    %vm62 = vcmp.eq.s32.totalorder %v40, 12
    %63 = vset.pattern.permute.xlu0 2
    %64 = vperm.xlu0 %63, %v36
    %v65 = vpop.permute.xlu0 %64
    %v67 = vsel %vm62, %v65, 0.0
    %v68 = vadd.f32 %v61, %v67
    %vm69 = vcmp.eq.s32.totalorder %v40, 13
    %v70 = vsel %vm69, 1, 0
    %v71 = vcvt.s32.f32 %v70
    %v72 = vadd.f32 %v68, %v71
    %74 = vrot.lane.b32.xlu0 %v72, 64
    %v75 = vpop.permute.xlu0 %74
    %vm77 = vcmask 523264
    %v78 = vsel %vm77, %v35, %v75
    %v79 = vpack.c.bf16 %v78, %v78
    %v80 = vld [vmem:[#allocation2] sm:$0xf]
    %v81 = vld [vmem:[#allocation2 + $0x4] sm:$0xf]
    %v82 = vld [vmem:[#allocation2 + $0x8] sm:$0xf]
    %v83 = vld [vmem:[#allocation2 + $0xc] sm:$0xf]
    %v84 = vld [vmem:[#allocation2 + $0x10] sm:$0xf]
    %v85 = vld [vmem:[#allocation2 + $0x14] sm:$0xf]
    %v86 = vld [vmem:[#allocation2 + $0x18] sm:$0xf]
    %v87 = vld [vmem:[#allocation2 + $0x1c] sm:$0xf]
    %v88 = vld [vmem:[#allocation2 + $0x20] sm:$0xf]
    %v89 = vld [vmem:[#allocation2 + $0x24] sm:$0xf]
    %v90 = vld [vmem:[#allocation2 + $0x28] sm:$0xf]
    %v91 = vld [vmem:[#allocation2 + $0x2c] sm:$0xf]
    %v92 = vld [vmem:[#allocation2 + $0x30] sm:$0xf]
    %v93 = vld [vmem:[#allocation2 + $0x34] sm:$0xf]
    %v94 = vld [vmem:[#allocation2 + $0x38] sm:$0xf]
    %v95 = vld [vmem:[#allocation2 + $0x3c] sm:$0xf]
    %v112 = vunpack.c.l.b16 %v80
    %v113 = vunpack.c.l.b16 %v81
    %v114 = vunpack.c.l.b16 %v82
    %v115 = vunpack.c.l.b16 %v83
    %v116 = vunpack.c.l.b16 %v84
    %v117 = vunpack.c.l.b16 %v85
    %v118 = vunpack.c.l.b16 %v86
    %v119 = vunpack.c.l.b16 %v87
    %v120 = vunpack.c.l.b16 %v88
    %v121 = vunpack.c.l.b16 %v89
    %v122 = vunpack.c.l.b16 %v90
    %v123 = vunpack.c.l.b16 %v91
    %v124 = vunpack.c.l.b16 %v92
    %v125 = vunpack.c.l.b16 %v93
    %v126 = vunpack.c.l.b16 %v94
    %v127 = vunpack.c.l.b16 %v95
    %v128 = vpack.c.b16 %v113, %v112
    %v129 = vpack.c.b16 %v115, %v114
    %v130 = vpack.c.b16 %v117, %v116
    %v131 = vpack.c.b16 %v119, %v118
    %v132 = vpack.c.b16 %v121, %v120
    %v133 = vpack.c.b16 %v123, %v122
    %v134 = vpack.c.b16 %v125, %v124
    %v135 = vpack.c.b16 %v127, %v126
    %144 = vmatprep.subr.bf16.mxu0 0
    %145 = vmatpush1.bf16.msra.mxu0 %v128
    %146 = vmatprep.subr.bf16.mxu0 0
    %147 = vmatpush1.bf16.msra.mxu0 %v129
    %148 = vmatprep.subr.bf16.mxu0 0
    %149 = vmatpush1.bf16.msra.mxu0 %v130
    %150 = vmatprep.subr.bf16.mxu0 0
    %151 = vmatpush1.bf16.msra.mxu0 %v131
    %152 = vmatprep.subr.bf16.mxu0 0
    %153 = vmatpush1.bf16.msra.mxu0 %v132
    %154 = vmatprep.subr.bf16.mxu0 0
    %155 = vmatpush1.bf16.msra.mxu0 %v133
    %156 = vmatprep.subr.bf16.mxu0 0
    %157 = vmatpush1.bf16.msra.mxu0 %v134
    %158 = vmatprep.subr.bf16.mxu0 0
    %159 = vmatpush1.bf16.msra.mxu0 %v135
    %160 = vmatprep.subr.bf16.mxu0 0
    %161 = vmatpush1.bf16.msra.mxu0 0
    %162 = vmatprep.subr.bf16.mxu0 0
    %163 = vmatpush1.bf16.msra.mxu0 0
    %164 = vmatprep.subr.bf16.mxu0 0
    %165 = vmatpush1.bf16.msra.mxu0 0
    %166 = vmatprep.subr.bf16.mxu0 0
    %167 = vmatpush1.bf16.msra.mxu0 0
    %168 = vmatprep.subr.bf16.mxu0 0
    %169 = vmatpush1.bf16.msra.mxu0 0
    %170 = vmatprep.subr.bf16.mxu0 0
    %171 = vmatpush1.bf16.msra.mxu0 0
    %172 = vmatprep.subr.bf16.mxu0 0
    %173 = vmatpush1.bf16.msra.mxu0 0
    %174 = vmatprep.subr.bf16.mxu0 0
    %175 = vmatpush1.bf16.msra.mxu0 0
    %176 = vmatprep.mubr.bf16.mxu0 0
    %177 = vmatmul.mubr.bf16.gmra.mrb[0].mxu0 %v79
    %v178 = vpop.f32.mrb[0].mxu0
    %v179 = vadd.f32 0.0, %v178
    %v180 = vpop.f32.mrb[0].mxu0
    %v181 = vpop.f32.mrb[0].mxu0
    %v182 = vpop.f32.mrb[0].mxu0
    %183 = vdwg.mxu0
    %v184 = vmax.f32 %v179, 0.0
    %v185 = vpack.c.bf16 %v184, %v184
    %v186 = vld [vmem:[#allocation2 + $0x40] sm:$0xf]
    %v187 = vld [vmem:[#allocation2 + $0x44] sm:$0xf]
    %v188 = vld [vmem:[#allocation2 + $0x48] sm:$0xf]
    %v189 = vld [vmem:[#allocation2 + $0x4c] sm:$0xf]
    %v190 = vld [vmem:[#allocation2 + $0x50] sm:$0xf]
    %v191 = vld [vmem:[#allocation2 + $0x54] sm:$0xf]
    %v192 = vld [vmem:[#allocation2 + $0x58] sm:$0xf]
    %v193 = vld [vmem:[#allocation2 + $0x5c] sm:$0xf]
    %v194 = vld [vmem:[#allocation2 + $0x60] sm:$0xf]
    %v195 = vld [vmem:[#allocation2 + $0x64] sm:$0xf]
    %v196 = vld [vmem:[#allocation2 + $0x68] sm:$0xf]
    %v197 = vld [vmem:[#allocation2 + $0x6c] sm:$0xf]
    %v198 = vld [vmem:[#allocation2 + $0x70] sm:$0xf]
    %v199 = vld [vmem:[#allocation2 + $0x74] sm:$0xf]
    %v200 = vld [vmem:[#allocation2 + $0x78] sm:$0xf]
    %v201 = vld [vmem:[#allocation2 + $0x7c] sm:$0xf]
    %v218 = vunpack.c.l.b16 %v186
    %v219 = vunpack.c.l.b16 %v187
    %v220 = vunpack.c.l.b16 %v188
    %v221 = vunpack.c.l.b16 %v189
    %v222 = vunpack.c.l.b16 %v190
    %v223 = vunpack.c.l.b16 %v191
    %v224 = vunpack.c.l.b16 %v192
    %v225 = vunpack.c.l.b16 %v193
    %v226 = vunpack.c.l.b16 %v194
    %v227 = vunpack.c.l.b16 %v195
    %v228 = vunpack.c.l.b16 %v196
    %v229 = vunpack.c.l.b16 %v197
    %v230 = vunpack.c.l.b16 %v198
    %v231 = vunpack.c.l.b16 %v199
    %v232 = vunpack.c.l.b16 %v200
    %v233 = vunpack.c.l.b16 %v201
    %v234 = vpack.c.b16 %v219, %v218
    %v235 = vpack.c.b16 %v221, %v220
    %v236 = vpack.c.b16 %v223, %v222
    %v237 = vpack.c.b16 %v225, %v224
    %v238 = vpack.c.b16 %v227, %v226
    %v239 = vpack.c.b16 %v229, %v228
    %v240 = vpack.c.b16 %v231, %v230
    %v241 = vpack.c.b16 %v233, %v232
    %250 = vmatprep.subr.bf16.mxu0 0
    %251 = vmatpush1.bf16.msra.mxu0 %v234
    %252 = vmatprep.subr.bf16.mxu0 0
    %253 = vmatpush1.bf16.msra.mxu0 %v235
    %254 = vmatprep.subr.bf16.mxu0 0
    %255 = vmatpush1.bf16.msra.mxu0 %v236
    %256 = vmatprep.subr.bf16.mxu0 0
    %257 = vmatpush1.bf16.msra.mxu0 %v237
    %258 = vmatprep.subr.bf16.mxu0 0
    %259 = vmatpush1.bf16.msra.mxu0 %v238
    %260 = vmatprep.subr.bf16.mxu0 0
    %261 = vmatpush1.bf16.msra.mxu0 %v239
    %262 = vmatprep.subr.bf16.mxu0 0
    %263 = vmatpush1.bf16.msra.mxu0 %v240
    %264 = vmatprep.subr.bf16.mxu0 0
    %265 = vmatpush1.bf16.msra.mxu0 %v241
    %266 = vmatprep.subr.bf16.mxu0 0
    %267 = vmatpush1.bf16.msra.mxu0 0
    %268 = vmatprep.subr.bf16.mxu0 0
    %269 = vmatpush1.bf16.msra.mxu0 0
    %270 = vmatprep.subr.bf16.mxu0 0
    %271 = vmatpush1.bf16.msra.mxu0 0
    %272 = vmatprep.subr.bf16.mxu0 0
    %273 = vmatpush1.bf16.msra.mxu0 0
    %274 = vmatprep.subr.bf16.mxu0 0
    %275 = vmatpush1.bf16.msra.mxu0 0
    %276 = vmatprep.subr.bf16.mxu0 0
    %277 = vmatpush1.bf16.msra.mxu0 0
    %278 = vmatprep.subr.bf16.mxu0 0
    %279 = vmatpush1.bf16.msra.mxu0 0
    %280 = vmatprep.subr.bf16.mxu0 0
    %281 = vmatpush1.bf16.msra.mxu0 0
    %282 = vmatprep.mubr.bf16.mxu0 0
    %283 = vmatmul.mubr.bf16.gmra.mrb[0].mxu0 %v185
    %v284 = vpop.f32.mrb[0].mxu0
    %v285 = vadd.f32 0.0, %v284
    %v286 = vpop.f32.mrb[0].mxu0
    %v287 = vpop.f32.mrb[0].mxu0
    %v288 = vpop.f32.mrb[0].mxu0
    %289 = vdwg.mxu0
    %v290 = vmul.f32 %v285, 0.5
    %v291 = vmul.f32 %v290, 1.442695
    %v292 = vpow.pop %v291
    %294 = vrot.lane.b32.xlu0 %v292, 112
    %v295 = vpop.permute.xlu0 %294
    %v297 = vmul.f32 %v37, %v295
    %v298 = vadd.f32 %v285, %v297
    %vm299 = vcmask 130048
    %v300 = vsel %vm299, %v298, 0.0
    %v301 = vsel %vm77, %v300, %v75
    %v302 = vpack.c.bf16 %v301, %v301
    %v303 = vld [vmem:[#allocation2 + $0x80] sm:$0xf]
    %v304 = vld [vmem:[#allocation2 + $0x84] sm:$0xf]
    %v305 = vld [vmem:[#allocation2 + $0x88] sm:$0xf]
    %v306 = vld [vmem:[#allocation2 + $0x8c] sm:$0xf]
    %v307 = vld [vmem:[#allocation2 + $0x90] sm:$0xf]
    %v308 = vld [vmem:[#allocation2 + $0x94] sm:$0xf]
    %v309 = vld [vmem:[#allocation2 + $0x98] sm:$0xf]
    %v310 = vld [vmem:[#allocation2 + $0x9c] sm:$0xf]
    %v311 = vld [vmem:[#allocation2 + $0xa0] sm:$0xf]
    %v312 = vld [vmem:[#allocation2 + $0xa4] sm:$0xf]
    %v313 = vld [vmem:[#allocation2 + $0xa8] sm:$0xf]
    %v314 = vld [vmem:[#allocation2 + $0xac] sm:$0xf]
    %v315 = vld [vmem:[#allocation2 + $0xb0] sm:$0xf]
    %v316 = vld [vmem:[#allocation2 + $0xb4] sm:$0xf]
    %v317 = vld [vmem:[#allocation2 + $0xb8] sm:$0xf]
    %v318 = vld [vmem:[#allocation2 + $0xbc] sm:$0xf]
    %v335 = vunpack.c.l.b16 %v303
    %v336 = vunpack.c.l.b16 %v304
    %v337 = vunpack.c.l.b16 %v305
    %v338 = vunpack.c.l.b16 %v306
    %v339 = vunpack.c.l.b16 %v307
    %v340 = vunpack.c.l.b16 %v308
    %v341 = vunpack.c.l.b16 %v309
    %v342 = vunpack.c.l.b16 %v310
    %v343 = vunpack.c.l.b16 %v311
    %v344 = vunpack.c.l.b16 %v312
    %v345 = vunpack.c.l.b16 %v313
    %v346 = vunpack.c.l.b16 %v314
    %v347 = vunpack.c.l.b16 %v315
    %v348 = vunpack.c.l.b16 %v316
    %v349 = vunpack.c.l.b16 %v317
    %v350 = vunpack.c.l.b16 %v318
    %v351 = vpack.c.b16 %v336, %v335
    %v352 = vpack.c.b16 %v338, %v337
    %v353 = vpack.c.b16 %v340, %v339
    %v354 = vpack.c.b16 %v342, %v341
    %v355 = vpack.c.b16 %v344, %v343
    %v356 = vpack.c.b16 %v346, %v345
    %v357 = vpack.c.b16 %v348, %v347
    %v358 = vpack.c.b16 %v350, %v349
    %367 = vmatprep.subr.bf16.mxu0 0
    %368 = vmatpush1.bf16.msra.mxu0 %v351
    %369 = vmatprep.subr.bf16.mxu0 0
    %370 = vmatpush1.bf16.msra.mxu0 %v352
    %371 = vmatprep.subr.bf16.mxu0 0
    %372 = vmatpush1.bf16.msra.mxu0 %v353
    %373 = vmatprep.subr.bf16.mxu0 0
    %374 = vmatpush1.bf16.msra.mxu0 %v354
    %375 = vmatprep.subr.bf16.mxu0 0
    %376 = vmatpush1.bf16.msra.mxu0 %v355
    %377 = vmatprep.subr.bf16.mxu0 0
    %378 = vmatpush1.bf16.msra.mxu0 %v356
    %379 = vmatprep.subr.bf16.mxu0 0
    %380 = vmatpush1.bf16.msra.mxu0 %v357
    %381 = vmatprep.subr.bf16.mxu0 0
    %382 = vmatpush1.bf16.msra.mxu0 %v358
    %383 = vmatprep.subr.bf16.mxu0 0
    %384 = vmatpush1.bf16.msra.mxu0 0
    %385 = vmatprep.subr.bf16.mxu0 0
    %386 = vmatpush1.bf16.msra.mxu0 0
    %387 = vmatprep.subr.bf16.mxu0 0
    %388 = vmatpush1.bf16.msra.mxu0 0
    %389 = vmatprep.subr.bf16.mxu0 0
    %390 = vmatpush1.bf16.msra.mxu0 0
    %391 = vmatprep.subr.bf16.mxu0 0
    %392 = vmatpush1.bf16.msra.mxu0 0
    %393 = vmatprep.subr.bf16.mxu0 0
    %394 = vmatpush1.bf16.msra.mxu0 0
    %395 = vmatprep.subr.bf16.mxu0 0
    %396 = vmatpush1.bf16.msra.mxu0 0
    %397 = vmatprep.subr.bf16.mxu0 0
    %398 = vmatpush1.bf16.msra.mxu0 0
    %399 = vmatprep.mubr.bf16.mxu0 0
    %400 = vmatmul.mubr.bf16.gmra.mrb[0].mxu0 %v302
    %v401 = vpop.f32.mrb[0].mxu0
    %v402 = vadd.f32 0.0, %v401
    %v403 = vpop.f32.mrb[0].mxu0
    %v404 = vpop.f32.mrb[0].mxu0
    %v405 = vpop.f32.mrb[0].mxu0
    %406 = vdwg.mxu0
    %v407 = vmax.f32 %v402, 0.0
    %v408 = vpack.c.bf16 %v407, %v407
    %v409 = vld [vmem:[#allocation2 + $0xc0] sm:$0xf]
    %v410 = vld [vmem:[#allocation2 + $0xc4] sm:$0xf]
    %v411 = vld [vmem:[#allocation2 + $0xc8] sm:$0xf]
    %v412 = vld [vmem:[#allocation2 + $0xcc] sm:$0xf]
    %v413 = vld [vmem:[#allocation2 + $0xd0] sm:$0xf]
    %v414 = vld [vmem:[#allocation2 + $0xd4] sm:$0xf]
    %v415 = vld [vmem:[#allocation2 + $0xd8] sm:$0xf]
    %v416 = vld [vmem:[#allocation2 + $0xdc] sm:$0xf]
    %v417 = vld [vmem:[#allocation2 + $0xe0] sm:$0xf]
    %v418 = vld [vmem:[#allocation2 + $0xe4] sm:$0xf]
    %v419 = vld [vmem:[#allocation2 + $0xe8] sm:$0xf]
    %v420 = vld [vmem:[#allocation2 + $0xec] sm:$0xf]
    %v421 = vld [vmem:[#allocation2 + $0xf0] sm:$0xf]
    %v422 = vld [vmem:[#allocation2 + $0xf4] sm:$0xf]
    %v423 = vld [vmem:[#allocation2 + $0xf8] sm:$0xf]
    %v424 = vld [vmem:[#allocation2 + $0xfc] sm:$0xf]
    %v441 = vunpack.c.l.b16 %v409
    %v442 = vunpack.c.l.b16 %v410
    %v443 = vunpack.c.l.b16 %v411
    %v444 = vunpack.c.l.b16 %v412
    %v445 = vunpack.c.l.b16 %v413
    %v446 = vunpack.c.l.b16 %v414
    %v447 = vunpack.c.l.b16 %v415
    %v448 = vunpack.c.l.b16 %v416
    %v449 = vunpack.c.l.b16 %v417
    %v450 = vunpack.c.l.b16 %v418
    %v451 = vunpack.c.l.b16 %v419
    %v452 = vunpack.c.l.b16 %v420
    %v453 = vunpack.c.l.b16 %v421
    %v454 = vunpack.c.l.b16 %v422
    %v455 = vunpack.c.l.b16 %v423
    %v456 = vunpack.c.l.b16 %v424
    %v457 = vpack.c.b16 %v442, %v441
    %v458 = vpack.c.b16 %v444, %v443
    %v459 = vpack.c.b16 %v446, %v445
    %v460 = vpack.c.b16 %v448, %v447
    %v461 = vpack.c.b16 %v450, %v449
    %v462 = vpack.c.b16 %v452, %v451
    %v463 = vpack.c.b16 %v454, %v453
    %v464 = vpack.c.b16 %v456, %v455
    %473 = vmatprep.subr.bf16.mxu0 0
    %474 = vmatpush1.bf16.msra.mxu0 %v457
    %475 = vmatprep.subr.bf16.mxu0 0
    %476 = vmatpush1.bf16.msra.mxu0 %v458
    %477 = vmatprep.subr.bf16.mxu0 0
    %478 = vmatpush1.bf16.msra.mxu0 %v459
    %479 = vmatprep.subr.bf16.mxu0 0
    %480 = vmatpush1.bf16.msra.mxu0 %v460
    %481 = vmatprep.subr.bf16.mxu0 0
    %482 = vmatpush1.bf16.msra.mxu0 %v461
    %483 = vmatprep.subr.bf16.mxu0 0
    %484 = vmatpush1.bf16.msra.mxu0 %v462
    %485 = vmatprep.subr.bf16.mxu0 0
    %486 = vmatpush1.bf16.msra.mxu0 %v463
    %487 = vmatprep.subr.bf16.mxu0 0
    %488 = vmatpush1.bf16.msra.mxu0 %v464
    %489 = vmatprep.subr.bf16.mxu0 0
    %490 = vmatpush1.bf16.msra.mxu0 0
    %491 = vmatprep.subr.bf16.mxu0 0
    %492 = vmatpush1.bf16.msra.mxu0 0
    %493 = vmatprep.subr.bf16.mxu0 0
    %494 = vmatpush1.bf16.msra.mxu0 0
    %495 = vmatprep.subr.bf16.mxu0 0
    %496 = vmatpush1.bf16.msra.mxu0 0
    %497 = vmatprep.subr.bf16.mxu0 0
    %498 = vmatpush1.bf16.msra.mxu0 0
    %499 = vmatprep.subr.bf16.mxu0 0
    %500 = vmatpush1.bf16.msra.mxu0 0
    %501 = vmatprep.subr.bf16.mxu0 0
    %502 = vmatpush1.bf16.msra.mxu0 0
    %503 = vmatprep.subr.bf16.mxu0 0
    %504 = vmatpush1.bf16.msra.mxu0 0
    %505 = vmatprep.mubr.bf16.mxu0 0
    %506 = vmatmul.mubr.bf16.gmra.mrb[0].mxu0 %v408
    %v507 = vpop.f32.mrb[0].mxu0
    %v508 = vadd.f32 0.0, %v507
    %v509 = vpop.f32.mrb[0].mxu0
    %v510 = vpop.f32.mrb[0].mxu0
    %v511 = vpop.f32.mrb[0].mxu0
    %512 = vdwg.mxu0
    %v513 = vsub.f32 0.0, %v508
    %v514 = vmul.f32 %v513, 1.442695
    %v515 = vpow.pop %v514
    %v516 = vadd.f32 %v515, 1.0
    %v517 = vrcp.pop %v516
    %v518 = vmul.f32 1.0, %v517
    %520 = vrot.lane.b32.xlu0 %v285, 64
    %v521 = vpop.permute.xlu0 %520
    %524 = vrot.lane.b32.xlu0 %v298, 96
    %v525 = vpop.permute.xlu0 %524
    %v527 = vsel %vm77, %v518, %v521
    %vm528 = vcmask 654336
    %v529 = vsel %vm528, %v527, %v521
    %vm530 = vcmask 785408
    %v531 = vsel %vm530, %v529, %v525
    %vm532 = vcmask 916480
    %v533 = vsel %vm532, %v531, 0.0
    %534 = vst [vmem:[%s5] sm:$0xff] %v533
    // Predicated region
    $region26: #{vae_forward.1} parent=1 // pred_check
      _
    $region27: #{vae_forward.1} parent=1 // pred_check_branch
      %536 = sbr.rel (0) target = $region29
    $region28: #{vae_forward.1} parent=1 // pred_region
      _
    $region29: #{vae_forward.1} parent=1 // pred_fallthru
      _
    // Predicated region
    $region30: #{vae_forward.1} parent=1 // pred_check
      _
    $region31: #{vae_forward.1} parent=1 // pred_check_branch
      %538 = sbr.rel (0) target = $region33
    $region32: #{vae_forward.1} parent=1 // pred_region
      _
    $region33: #{vae_forward.1} parent=1 // pred_fallthru
      _
    %539 = vsyncpa [#allocation3], 1

</llo_original>
